<compile_context>
chip_gen: v7x
topology: tpu7x:2x2x1
jax: 0.10.0
libtpu: 0.0.40
codegen_flags: <defaults>
</compile_context>

<pallas_src>
import jax
import jax.numpy as jnp
from jax.experimental import pallas as pl
from jax.experimental.pallas import tpu as pltpu


def _identity_copy_kernel(x_hbm_ref, o_hbm_ref, copy_sem):
    """Copy the whole input array to the output with one HBM->HBM DMA.

    No tensor-core load/store is emitted: the copy runs at DMA-engine
    bandwidth with zero vreg pressure and zero VMEM footprint.
    """
    cp = pltpu.make_async_copy(x_hbm_ref, o_hbm_ref, copy_sem)
    cp.start()
    cp.wait()


def identity_extractor(x: jax.Array, *, copy: bool = True) -> jax.Array:
    """IdentityExtractor.forward(x) == x.

    Args:
        x: (batch, obs_dim) observations (the module requires 1D obs space,
           so a batch of observations is a 2D array).
        copy: If False, return the input array as-is (zero compute, zero HBM
              traffic — the recommended hot path for a pure identity).
              If True, materialize a distinct output buffer via a single
              Pallas HBM->HBM DMA copy kernel.

    Returns:
        (batch, obs_dim) array identical to the input.
    """
    if not copy:
        # Fast path: an identity has zero compute and needs zero data movement.
        return x

    return pl.pallas_call(
        _identity_copy_kernel,
        out_shape=jax.ShapeDtypeStruct(x.shape, x.dtype),
        # Raw HBM refs for both operands: no auto-pipelining, no VMEM tiles,
        # no per-grid-step overhead.  Works for any (batch, obs_dim) and any
        # dtype on v5e / v6e / v7x.
        in_specs=[pl.BlockSpec(memory_space=pl.ANY)],
        out_specs=pl.BlockSpec(memory_space=pl.ANY),
        scratch_shapes=[pltpu.SemaphoreType.DMA(())],
    )(x)


def identity_extractor_output_size(obs_dim: int) -> int:
    """Mirror of IdentityExtractor.output_size: the observation dimension."""
    return obs_dim


if __name__ == "__main__":
    # env.observation_space.shape == (obs_dim,)  -> 1D observations only.
    batch, obs_dim = 4, 32
    key = jax.random.PRNGKey(0)
    x = jax.random.normal(key, (batch, obs_dim), dtype=jnp.float32)

    # Pallas path: materialized copy via a single HBM->HBM DMA.
    y = identity_extractor(x, copy=True)
    y = jax.block_until_ready(y)

    assert y.shape == x.shape
    assert y.dtype == x.dtype
    assert jnp.array_equal(y, x)

    # Zero-traffic path: identity returns the input array itself.
    y_fast = identity_extractor(x, copy=False)
    assert y_fast is x

    assert identity_extractor_output_size(obs_dim) == obs_dim

    print("KERNEL_OK")
</pallas_src>

<mosaic_0001>
module attributes {stable_mosaic.version = 11 : i64} {
  func.func @_identity_copy_kernel(%arg0: memref<4x32xf32, #tpu.memory_space<any>>, %arg1: memref<4x32xf32, #tpu.memory_space<any>>, %arg2: memref<!tpu.dma_semaphore, #tpu.memory_space<semaphore_mem>>) attributes {dimension_semantics = [], scalar_prefetch = 0 : i64, scratch_operands = 1 : i64, tpu.core_type = #tpu.core_type<tc>} {
    tpu.enqueue_dma source(%arg0 : memref<4x32xf32, #tpu.memory_space<any>>) target(%arg1 : memref<4x32xf32, #tpu.memory_space<any>>) target_semaphore(%arg2 : memref<!tpu.dma_semaphore, #tpu.memory_space<semaphore_mem>>)
    tpu.wait_dma2 semaphore(%arg2 : memref<!tpu.dma_semaphore, #tpu.memory_space<semaphore_mem>>) src(%arg0 : memref<4x32xf32, #tpu.memory_space<any>>) dst(%arg1 : memref<4x32xf32, #tpu.memory_space<any>>)
    return
  }
}

</mosaic_0001>

<llo_original>
// kernel: tpu_custom_call.1
$region0: #{tpu_custom_call.1}
  #allocation0 [shape = 'u32[]', space=smem, size = 0x4, offset = 0x4, fixed_abs, tag = 'smem constant byte address 0x4 - core index']
  #allocation1 [shape = 'u32[144,128]{1,0:T(1,128)}', space=vmem, size = 0x12000, scoped, tag = 'internal scratch']
  #allocation2 [shape = 's32[1]{0}', space=sflag, size = 0x4, scoped, tag = 'scratch operand']
  #allocation3 [shape = 's32[]', space=sflag, size = 0x4, offset = 0, fixed_abs, tag = 'sflag constant byte address 0x0 - dummy sync flag']
  #allocation4 [shape = 'u32[0]{0}', space=smem, size = 0, offset = 0, fixed_abs, tag = 'smem constant byte address 0x0 - null']
  %s0 = inlined_call_operand.hbm [shape: f32[4,32], index: 0, kind: input, shape index: {}]
  %s1 = inlined_call_operand.hbm [shape: f32[4,32], index: 1, kind: output, shape index: {}]
  %s2 = sld [smem:[#allocation0]]
  $region2: #{tpu_custom_call.1} parent=0
    _
  %s4 = ssub.s32 1, %s2
  %s5 = scalar_select 0, %s4, %s2
  %s7 = sshll.u32 1, 14
  %s8 = sxor.u32 4294967295, %s7
  %s11 = sshll.u32 3, 24
  %s12 = sxor.u32 4294967295, %s11
  %s13 = sand.u32 0, %s12
  %s15 = sor.u32 %s13, 0
  %18 = dma.general %s0, 64, %s1, [#allocation2], [#allocation3], [#allocation4], %s15, 0
  %s19 = smul.u32 4, 1
  %s20 = sshll.u32 %s19, 4
  %21 = dma.done [#allocation2], %s20
  %22 = vsyncmov [#allocation2]
  %s23 = vpop.sfrf %22
  %p24 = scmp.eq.s32.totalorder %s23, 0
  %p25 = pneg %p24
  %27 = shalt.err (%p25)

</llo_original>
